<compile_context>
chip_gen: v5e
topology: v5e:2x2
jax: 0.10.0
libtpu: 0.0.40
codegen_flags: <defaults>
</compile_context>

<pallas_src>
import functools

import numpy as np
import jax
import jax.numpy as jnp
from jax.experimental import pallas as pl
from jax.experimental.pallas import tpu as pltpu


# ------------------------------ small helpers --------------------------------

def _round_up(a, b):
    return ((a + b - 1) // b) * b


def _cdiv(a, b):
    return (a + b - 1) // b


def _cout_cap():
    # 256-wide Cout tiles feed the 256-wide MXU on v6e/v7x; keep 128 on v5e.
    try:
        kind = jax.devices()[0].device_kind.lower()
    except Exception:
        kind = ""
    return 128 if ("v5 lite" in kind or "v5e" in kind or "v5lite" in kind) else 256


_COUT_CAP = _cout_cap()


def _cout_tile(cout):
    return min(cout, _COUT_CAP)


def _m_tile(m):
    # Largest reasonable M tile, but always >= 2 tiles when possible so both v7x
    # TensorCores get work; tiles are multiples of 8 sublanes.
    if m >= 1024:
        tm = 512
    elif m >= 16:
        tm = _round_up(_cdiv(m, 2), 8)
    else:
        tm = _round_up(max(m, 1), 8)
    return tm, _round_up(m, tm)


def _vmem_limit(block_bytes):
    # 2x for double-buffered pipelining + slack for the f32 accumulator / epilogue.
    need = 2 * int(sum(block_bytes)) + (4 << 20)
    return int(min(max(need, 32 << 20), 64 << 20))


# ----------------------------- Pallas kernels --------------------------------

def _gemm_kernel(p_ref, w_ref, b_ref, o_ref, *, relu):
    """out = relu?( patches @ W_foldedBN + bias )   (one M x Cout tile)."""
    acc = jnp.dot(p_ref[...], w_ref[...], preferred_element_type=jnp.float32)
    out = acc + b_ref[...]
    if relu:
        out = jnp.maximum(out, 0.0)
    o_ref[...] = out.astype(o_ref.dtype)


def _gemm_res_kernel(p_ref, w_ref, b_ref, r_ref, o_ref, *, relu):
    """out = relu?( patches @ W_foldedBN + bias + residual )."""
    acc = jnp.dot(p_ref[...], w_ref[...], preferred_element_type=jnp.float32)
    out = acc + b_ref[...] + r_ref[...].astype(jnp.float32)
    if relu:
        out = jnp.maximum(out, 0.0)
    o_ref[...] = out.astype(o_ref.dtype)


def _conv3x3_kernel(x_ref, w_ref, b_ref, o_ref, *, th, wo, dil, relu):
    """Direct 3x3 stride-1 (dilated) conv: 9-tap in-kernel accumulation.

    x_ref: (1, th+2*dil, wo+2*dil, Cin) halo'ed input row-chunk (bf16)
    w_ref: (9, Cin, TC) per-tap weights with BN scale folded in (bf16)
    o_ref: (1, th*wo, TC) bf16
    """
    cin = x_ref.shape[-1]
    tc = o_ref.shape[-1]
    acc = jnp.zeros((th * wo, tc), jnp.float32)
    for t in range(9):
        dy = (t // 3) * dil
        dx = (t % 3) * dil
        xt = x_ref[0, dy:dy + th, dx:dx + wo, :].reshape(th * wo, cin)
        acc = acc + jnp.dot(xt, w_ref[t], preferred_element_type=jnp.float32)
    out = acc + b_ref[...]
    if relu:
        out = jnp.maximum(out, 0.0)
    o_ref[0] = out.astype(o_ref.dtype)


def _conv3x3_res_kernel(x_ref, w_ref, b_ref, r_ref, o_ref, *, th, wo, dil, relu):
    """Same as _conv3x3_kernel plus fused residual add."""
    cin = x_ref.shape[-1]
    tc = o_ref.shape[-1]
    acc = jnp.zeros((th * wo, tc), jnp.float32)
    for t in range(9):
        dy = (t // 3) * dil
        dx = (t % 3) * dil
        xt = x_ref[0, dy:dy + th, dx:dx + wo, :].reshape(th * wo, cin)
        acc = acc + jnp.dot(xt, w_ref[t], preferred_element_type=jnp.float32)
    out = acc + b_ref[...] + r_ref[0].astype(jnp.float32)
    if relu:
        out = jnp.maximum(out, 0.0)
    o_ref[0] = out.astype(o_ref.dtype)


def _head_kernel(x_ref, w_ref, b_ref, o_ref):
    """AdaptiveAvgPool2d((1,1)) + flatten + Linear, fused."""
    pooled = jnp.mean(x_ref[...].astype(jnp.float32), axis=1)          # (N, C)
    o_ref[...] = (jnp.dot(pooled.astype(jnp.bfloat16), w_ref[...],
                          preferred_element_type=jnp.float32) + b_ref[...])


# ------------------------- fused-conv wrappers --------------------------------

def _matmul_bn(patches, w, bias, residual, relu):
    """Tiled GEMM: relu?(patches @ W + bias [+ res]) with bf16 in/out, f32 acc."""
    m, kdim = patches.shape
    cout = w.shape[1]
    tc = _cout_tile(cout)
    tm, m_pad = _m_tile(m)
    if m_pad != m:
        patches = jnp.pad(patches, ((0, m_pad - m), (0, 0)))
        if residual is not None:
            residual = jnp.pad(residual, ((0, m_pad - m), (0, 0)))
    # Cout tiles on the outer (slow) grid axis so the weight block stays resident
    # while activation tiles stream on the inner axis.
    in_specs = [
        pl.BlockSpec((tm, kdim), lambda j, i: (i, 0)),
        pl.BlockSpec((kdim, tc), lambda j, i: (0, j)),
        pl.BlockSpec((1, tc), lambda j, i: (0, j)),
    ]
    args = [patches, w, bias]
    blocks = [tm * kdim * 2, kdim * tc * 2, tc * 4, tm * tc * 2, tm * tc * 4]
    if residual is None:
        kern = functools.partial(_gemm_kernel, relu=relu)
    else:
        kern = functools.partial(_gemm_res_kernel, relu=relu)
        in_specs.append(pl.BlockSpec((tm, tc), lambda j, i: (i, j)))
        args.append(residual)
        blocks.append(tm * tc * 2)
    out = pl.pallas_call(
        kern,
        out_shape=jax.ShapeDtypeStruct((m_pad, cout), jnp.bfloat16),
        grid=(cout // tc, m_pad // tm),
        in_specs=in_specs,
        out_specs=pl.BlockSpec((tm, tc), lambda j, i: (i, j)),
        compiler_params=pltpu.CompilerParams(
            dimension_semantics=("parallel", "parallel"),
            vmem_limit_bytes=_vmem_limit(blocks)),
    )(*args)
    return out[:m] if m_pad != m else out


def _conv3x3_s1(x, p, residual, relu):
    """Direct (no im2col) 3x3 stride-1, optionally dilated, conv + BN (+res) (+relu)."""
    n, h, w, cin = x.shape
    dil = p["dil"]
    cout = p["w"].shape[-1]
    x = x.astype(jnp.bfloat16)

    th = min(h, max(1, 512 // max(w, 1)))          # ~512 output rows (M) per block
    h_pad = _round_up(h, th)
    n_t = h_pad // th
    hc = th + 2 * dil                              # chunk rows incl. halo
    wp = w + 2 * dil
    xp = jnp.pad(x, ((0, 0), (dil, dil + h_pad - h), (dil, dil), (0, 0)))
    # Overlapping row chunks (halo duplication ~ (th+2d)/th, not 9x im2col).
    chunks = jnp.stack([xp[:, t * th:t * th + hc] for t in range(n_t)], axis=1)
    chunks = chunks.reshape(n * n_t, hc, wp, cin)

    tc = _cout_tile(cout)
    in_specs = [
        pl.BlockSpec((1, hc, wp, cin), lambda j, i: (i, 0, 0, 0)),
        pl.BlockSpec((9, cin, tc), lambda j, i: (0, 0, j)),
        pl.BlockSpec((1, tc), lambda j, i: (0, j)),
    ]
    args = [chunks, p["w"], p["b"]]
    blocks = [hc * wp * cin * 2, 9 * cin * tc * 2, tc * 4,
              th * w * tc * 2, th * w * tc * 4, th * w * cin * 2]
    if residual is None:
        kern = functools.partial(_conv3x3_kernel, th=th, wo=w, dil=dil, relu=relu)
    else:
        kern = functools.partial(_conv3x3_res_kernel, th=th, wo=w, dil=dil, relu=relu)
        r = residual.astype(jnp.bfloat16)
        if h_pad != h:
            r = jnp.pad(r, ((0, 0), (0, h_pad - h), (0, 0), (0, 0)))
        args.append(r.reshape(n * n_t, th * w, cout))
        in_specs.append(pl.BlockSpec((1, th * w, tc), lambda j, i: (i, 0, j)))
        blocks.append(th * w * tc * 2)

    out = pl.pallas_call(
        kern,
        out_shape=jax.ShapeDtypeStruct((n * n_t, th * w, cout), jnp.bfloat16),
        grid=(cout // tc, n * n_t),
        in_specs=in_specs,
        out_specs=pl.BlockSpec((1, th * w, tc), lambda j, i: (i, 0, j)),
        compiler_params=pltpu.CompilerParams(
            dimension_semantics=("parallel", "parallel"),
            vmem_limit_bytes=_vmem_limit(blocks)),
    )(*args)
    return out.reshape(n, h_pad, w, cout)[:, :h]


def conv_bn(x, p, *, relu, residual=None):
    """Conv2d(bias=False) + folded eval-mode BatchNorm (+ residual) (+ ReLU)."""
    k, stride, pad, dil = p["k"], p["stride"], p["pad"], p["dil"]
    if k == 3 and stride == 1:
        return _conv3x3_s1(x, p, residual, relu)   # direct path, no im2col
    n, h, w, cin = x.shape
    ho = (h + 2 * pad - dil * (k - 1) - 1) // stride + 1
    wo = (w + 2 * pad - dil * (k - 1) - 1) // stride + 1
    xp = jnp.pad(x, ((0, 0), (pad, pad), (pad, pad), (0, 0))) if pad else x
    if k == 1:
        patches = xp[:, ::stride, ::stride, :] if stride > 1 else xp
        patches = patches.reshape(n * ho * wo, cin)
    else:
        # im2col kept only for the stem and stride-2 3x3 convs (output area is 1/4,
        # so the expansion is ~2.25x input bytes, not 9x).
        cols = [xp[:, i * dil:i * dil + stride * (ho - 1) + 1:stride,
                   j * dil:j * dil + stride * (wo - 1) + 1:stride, :]
                for i in range(k) for j in range(k)]
        patches = jnp.concatenate(cols, axis=-1).reshape(n * ho * wo, k * k * cin)
    patches = patches.astype(jnp.bfloat16)
    kdim = p["w"].shape[0]
    if patches.shape[1] < kdim:                    # stem: K padded 147 -> 256
        patches = jnp.pad(patches, ((0, 0), (0, kdim - patches.shape[1])))
    res2d = None
    if residual is not None:
        res2d = residual.reshape(n * ho * wo, -1).astype(jnp.bfloat16)
    out2d = _matmul_bn(patches, p["w"], p["b"], res2d, relu)
    return out2d.reshape(n, ho, wo, -1)


def maxpool_3x3_s2_p1(x):
    # Fused elementwise max tree over the 9 shifted strided slices (no (9,M,C) stack).
    n, h, w, c = x.shape
    ho = (h + 2 - 3) // 2 + 1
    wo = (w + 2 - 3) // 2 + 1
    xp = jnp.pad(x, ((0, 0), (1, 1), (1, 1), (0, 0)), constant_values=-jnp.inf)
    out = None
    for i in range(3):
        for j in range(3):
            win = xp[:, i:i + 2 * (ho - 1) + 1:2, j:j + 2 * (wo - 1) + 1:2, :]
            out = win if out is None else jnp.maximum(out, win)
    return out


def head(x, fc_w, fc_b):
    n, h, w, c = x.shape
    return pl.pallas_call(
        _head_kernel,
        out_shape=jax.ShapeDtypeStruct((n, fc_w.shape[1]), jnp.float32),
    )(x.reshape(n, h * w, c).astype(jnp.bfloat16),
      fc_w.astype(jnp.bfloat16), fc_b)


# ----------------------------- block / network --------------------------------

def run_block(x, blk):
    identity = x
    if blk["kind"] == "basic":
        out = conv_bn(x, blk["conv1"], relu=True)
        if blk["down"] is not None:
            identity = conv_bn(x, blk["down"], relu=False)
        return conv_bn(out, blk["conv2"], relu=True, residual=identity)
    # Bottleneck
    out = conv_bn(x, blk["conv1"], relu=True)
    out = conv_bn(out, blk["conv2"], relu=True)
    if blk["down"] is not None:
        identity = conv_bn(x, blk["down"], relu=False)
    return conv_bn(out, blk["conv3"], relu=True, residual=identity)


def resnet_forward(x_nchw, params):
    x = jnp.transpose(x_nchw, (0, 2, 3, 1))            # NCHW -> NHWC (lane-dense C)
    x = conv_bn(x.astype(jnp.float32), params["stem"], relu=True)   # conv1+bn1+relu
    x = maxpool_3x3_s2_p1(x)
    for stage in params["layers"]:                      # layer1..layer4
        for blk in stage:
            x = run_block(x, blk)
    return head(x, params["fc_w"], params["fc_b"])      # avgpool + flatten + fc


# ------------------------------- parameters ----------------------------------

def _fold_bn(cout, eps=1e-5):
    # eval-mode BatchNorm with fresh stats (gamma=1, beta=0, mean=0, var=1).
    gamma = np.ones((cout,), np.float32)
    beta = np.zeros((cout,), np.float32)
    mean = np.zeros((cout,), np.float32)
    var = np.ones((cout,), np.float32)
    scale = gamma / np.sqrt(var + eps)
    bias = beta - mean * scale
    return scale, bias


def _init_conv_bn(key, cin, cout, k, stride, pad, dil=1):
    fan_out = k * k * cout                              # kaiming_normal_, fan_out
    w = jax.random.normal(key, (k, k, cin, cout), jnp.float32) * np.sqrt(2.0 / fan_out)
    scale, bias = _fold_bn(cout)
    w = w * scale[None, None, None, :]                  # fold BN scale into weights
    if k == 3 and stride == 1:                          # direct-conv layout: (9,Cin,Cout)
        w_store = w.reshape(9, cin, cout).astype(jnp.bfloat16)
    else:                                               # GEMM layout: (K, Cout)
        kdim = k * k * cin
        w2 = w.reshape(kdim, cout)
        if cin <= 4 and kdim % 128 != 0:                # stem: pad K 147 -> 256 lanes
            w2 = jnp.pad(w2, ((0, _round_up(kdim, 128) - kdim), (0, 0)))
        w_store = w2.astype(jnp.bfloat16)
    return dict(w=w_store, b=jnp.asarray(bias).reshape(1, cout),
                k=k, stride=stride, pad=pad, dil=dil)


def _init_basic_block(key, inplanes, planes, stride):
    # BasicBlock (expansion 1).  PyTorch raises for dilation>1, so dil is fixed at 1.
    k1, k2, k3 = jax.random.split(key, 3)
    down = None
    if stride != 1 or inplanes != planes:
        down = _init_conv_bn(k3, inplanes, planes, 1, stride, 0)
    return dict(kind="basic",
                conv1=_init_conv_bn(k1, inplanes, planes, 3, stride, 1),
                conv2=_init_conv_bn(k2, planes, planes, 3, 1, 1),
                down=down)


def _init_bottleneck(key, inplanes, planes, stride, dilation, base_width=64):
    width = int(planes * (base_width / 64.0))           # groups == 1
    k1, k2, k3, k4 = jax.random.split(key, 4)
    down = None
    if stride != 1 or inplanes != planes * 4:
        down = _init_conv_bn(k4, inplanes, planes * 4, 1, stride, 0)
    return dict(kind="bottleneck",
                conv1=_init_conv_bn(k1, inplanes, width, 1, 1, 0),
                conv2=_init_conv_bn(k2, width, width, 3, stride, dilation, dilation),
                conv3=_init_conv_bn(k3, width, planes * 4, 1, 1, 0),
                down=down)


def init_resnet_params(key, block="bottleneck", layers=(1, 1, 1, 1), num_classes=10,
                       replace_stride_with_dilation=None, width_per_group=64):
    """Mirrors torchvision ResNet._make_layer, including replace_stride_with_dilation."""
    if replace_stride_with_dilation is None:
        replace_stride_with_dilation = (False, False, False)
    expansion = 4 if block == "bottleneck" else 1
    n_blocks = sum(layers)
    keys = iter(jax.random.split(key, n_blocks + 2))

    params = dict(stem=_init_conv_bn(next(keys), 3, 64, 7, 2, 3))
    inplanes, dilation = 64, 1
    stage_cfg = [(64, layers[0], 1, False),
                 (128, layers[1], 2, replace_stride_with_dilation[0]),
                 (256, layers[2], 2, replace_stride_with_dilation[1]),
                 (512, layers[3], 2, replace_stride_with_dilation[2])]
    stages = []
    for planes, blocks, stride, dilate in stage_cfg:
        previous_dilation = dilation
        if dilate:
            dilation *= stride
            stride = 1
        blks = []
        for b in range(blocks):
            kb = next(keys)
            s = stride if b == 0 else 1
            d = previous_dilation if b == 0 else dilation
            if block == "bottleneck":
                blks.append(_init_bottleneck(kb, inplanes, planes, s, d, width_per_group))
            else:
                blks.append(_init_basic_block(kb, inplanes, planes, s))
            inplanes = planes * expansion
        stages.append(blks)
    params["layers"] = stages

    kw, kb = jax.random.split(next(keys))
    bound = 1.0 / np.sqrt(inplanes)
    params["fc_w"] = jax.random.uniform(kw, (inplanes, num_classes), jnp.float32,
                                        -bound, bound)
    params["fc_b"] = jax.random.uniform(kb, (1, num_classes), jnp.float32,
                                        -bound, bound)
    return params


# ----------------------------------- main -------------------------------------

if __name__ == "__main__":
    key = jax.random.PRNGKey(0)
    kx, kp = jax.random.split(key)
    x = jax.random.normal(kx, (2, 3, 32, 32), jnp.float32)        # small NCHW input

    # DeepLabV3 encoder configuration: Bottleneck blocks with stride replaced by
    # dilation in layer3/layer4 (output stride 8); tiny depth for the smoke test.
    params = init_resnet_params(kp, block="bottleneck", layers=(1, 1, 1, 1),
                                num_classes=10,
                                replace_stride_with_dilation=(False, True, True))

    logits = resnet_forward(x, params)
    jax.block_until_ready(logits)
    assert logits.shape == (2, 10)
    assert bool(jnp.all(jnp.isfinite(logits)))
    print("KERNEL_OK")
</pallas_src>

<mosaic_0001>
module attributes {stable_mosaic.version = 11 : i64} {
  func.func @_gemm_kernel(%arg0: i32, %arg1: i32, %arg2: memref<256x256xbf16, #tpu.memory_space<vmem>>, %arg3: memref<256x64xbf16, #tpu.memory_space<vmem>>, %arg4: memref<1x64xf32, #tpu.memory_space<vmem>>, %arg5: memref<256x64xbf16, #tpu.memory_space<vmem>>) attributes {dimension_semantics = [#tpu.dimension_semantics<parallel>, #tpu.dimension_semantics<parallel>], iteration_bounds = array<i64: 1, 2>, scalar_prefetch = 0 : i64, scratch_operands = 0 : i64, tpu.core_type = #tpu.core_type<tc>, window_params = [{transform_indices = @transform_0, window_bounds = array<i64: 256, 256>}, {transform_indices = @transform_1, window_bounds = array<i64: 256, 64>}, {transform_indices = @transform_2, window_bounds = array<i64: 1, 64>}, {transform_indices = @transform_3, window_bounds = array<i64: 256, 64>}]} {
    %c0 = arith.constant 0 : index
    %c0_0 = arith.constant 0 : index
    %0 = vector.load %arg2[%c0, %c0_0] : memref<256x256xbf16, #tpu.memory_space<vmem>>, vector<256x256xbf16>
    %c0_1 = arith.constant 0 : index
    %c0_2 = arith.constant 0 : index
    %1 = vector.load %arg3[%c0_1, %c0_2] : memref<256x64xbf16, #tpu.memory_space<vmem>>, vector<256x64xbf16>
    %cst = arith.constant dense<0.000000e+00> : vector<256x64xf32>
    %2 = tpu.matmul %0, %1, %cst {dimension_numbers = #tpu.dot_dimension_numbers<[1], [0], [0], [1], [0, 0, 1, 1], [], []>} : vector<256x256xbf16>, vector<256x64xbf16>, vector<256x64xf32> -> vector<256x64xf32>
    %c0_3 = arith.constant 0 : index
    %c0_4 = arith.constant 0 : index
    %3 = vector.load %arg4[%c0_3, %c0_4] : memref<1x64xf32, #tpu.memory_space<vmem>>, vector<1x64xf32>
    %4 = vector.broadcast %3 : vector<1x64xf32> to vector<256x64xf32>
    %5 = arith.addf %2, %4 : vector<256x64xf32>
    %cst_5 = arith.constant 0.000000e+00 : f32
    %6 = vector.broadcast %cst_5 : f32 to vector<256x64xf32>
    %7 = arith.maximumf %5, %6 : vector<256x64xf32>
    %8 = arith.truncf %7 : vector<256x64xf32> to vector<256x64xbf16>
    %c0_6 = arith.constant 0 : index
    %c0_7 = arith.constant 0 : index
    %9 = vector.load %arg5[%c0_6, %c0_7] : memref<256x64xbf16, #tpu.memory_space<vmem>>, vector<256x64xbf16>
    tpu.vector_store %arg5[%c0_6, %c0_7], %8 {strides = array<i32>} : memref<256x64xbf16, #tpu.memory_space<vmem>>, vector<256x64xbf16>,
    return
  }
  func.func @transform_0(%arg0: i32, %arg1: i32) -> (i32, i32) {
    %c0_i32 = arith.constant 0 : i32
    %c0_i32_0 = arith.constant 0 : i32
    return %arg1, %c0_i32 : i32, i32
  }
  func.func @transform_1(%arg0: i32, %arg1: i32) -> (i32, i32) {
    %c0_i32 = arith.constant 0 : i32
    %c0_i32_0 = arith.constant 0 : i32
    return %c0_i32, %arg0 : i32, i32
  }
  func.func @transform_2(%arg0: i32, %arg1: i32) -> (i32, i32) {
    %c0_i32 = arith.constant 0 : i32
    %c0_i32_0 = arith.constant 0 : i32
    return %c0_i32, %arg0 : i32, i32
  }
  func.func @transform_3(%arg0: i32, %arg1: i32) -> (i32, i32) {
    %c0_i32 = arith.constant 0 : i32
    return %arg1, %arg0 : i32, i32
  }
}

</mosaic_0001>

<llo_original>
// kernel: tpu_custom_call.1
$region0: #{tpu_custom_call.1}
  #allocation0 [shape = 'u32[]', space=smem, size = 0x4, offset = 0x4, fixed_abs, tag = 'smem constant byte address 0x4 - core index']
  #allocation1 [shape = 'u32[72,128]{1,0:T(1,128)}', space=vmem, size = 0x9000, scoped, tag = 'internal scratch']
  %s0 = inlined_call_operand.hbm [shape: bf16[512,256], index: 0, kind: input, shape index: {}]
  %s1 = inlined_call_operand.vmem [shape: bf16[256,64], index: 1, kind: input, shape index: {}]
  %s2 = inlined_call_operand.vmem [shape: f32[1,64], index: 2, kind: input, shape index: {}]
  %s3 = inlined_call_operand.vmem [shape: bf16[512,64], index: 3, kind: output, shape index: {}]
  %s4 = sld [smem:[#allocation0]]
  $region49: #{tpu_custom_call.1} parent=0
    _
  %s6 = ssub.s32 1, %s4
  %s7 = scalar_select 0, %s6, %s4
  $region1: #{tpu_custom_call.1} parent=0
    #allocation2 [shape = 'u8[262144]{0}', space=vmem, size = 0x40000, scoped, tag = 'input window, operand 0']
    #allocation3 [shape = 's32[2]{0}', space=sflag, size = 0x8, scoped, tag = 'scoped memory for tpu_custom_call.1']
    %8 = vsyncpa [#allocation3], 0
    %s9 = scalar_lea.sflag [#allocation3], 1
    %10 = vsyncpa %s9, 0
    loop: start=0, step=1, limit=4
    $region2: #{tpu_custom_call.1} parent=1 // loop_pre_header
      _
    $region3: #{tpu_custom_call.1} parent=1 // loop_header
      %s12 = sphi 0, %s16
      %p13 = scmp.ge.s32.totalorder %s12, 4
      %s19 = sphi 0, %s31
      %s20 = sphi 0, %s27
      %s21 = sphi 0, %s19
      %s22 = sphi 0, %s20
      %s23 = sphi 0, %s21
      %s24 = sphi 0, %s22
      %s34 = sphi 0, %s36
      %s37 = sphi 0, %s34
      %s38 = sphi 0, %s37
      %s54 = sphi 0, %s38
      %s60 = sphi 0, %s62
      %s63 = sphi 0, %s60
      %s64 = sphi 0, %s63
      %s80 = sphi 0, %s64
      %s86 = sphi 0, %s88
      %s89 = sphi 0, %s86
      %s90 = sphi 0, %s89
      %s106 = sphi 0, %s90
      %s114 = sphi 0, %s116
      %s117 = sphi 0, %s114
      %s118 = sphi 0, %s117
      %s134 = sphi 0, %s118
    $region4: #{tpu_custom_call.1} parent=1 // loop_header_branch
      %15 = sbr.rel (%p13) target = $region8
    $region5: #{tpu_custom_call.1} parent=1 // loop_body
      %s17 = ssub.s32 %s12, 1
      %s18 = ssub.s32 %s12, 2
      %s25 = sadd.s32 1, %s20
      %p26 = scmp.ge.s32.totalorder %s25, 2
      %s27 = scalar_select %p26, 0, %s25
      %s28 = sadd.s32 1, %s19
      %s29 = scalar_select %p26, %s28, %s19
      %p30 = scmp.ge.s32.totalorder %s29, 1
      %s31 = scalar_select %p30, 0, %s29
      %s32 = ssub.s32 %s20, %s27
      %p33 = scmp.eq.s32.totalorder %s32, 0
      %s35 = sadd.s32 %s34, 1
      %s36 = scalar_select %p33, %s34, %s35
      %p39 = pneg %p33
      %p40 = scmp.eq.s32.totalorder %s12, 1
      %p41 = por %p39, %p40
      %p42 = scmp.ne.s32.totalorder %s34, %s37
      %p43 = scmp.eq.s32.totalorder %s12, 0
      %p44 = por %p42, %p43
      %p45 = scmp.ne.s32.totalorder %s34, %s37
      %p46 = scmp.eq.s32.totalorder %s17, 1
      %p47 = por %p45, %p46
      %p48 = scmp.ne.s32.totalorder %s37, %s38
      %p49 = scmp.eq.s32.totalorder %s17, 0
      %p50 = por %p48, %p49
      %p51 = scmp.ne.s32.totalorder %s37, %s38
      %p52 = scmp.eq.s32.totalorder %s18, 1
      %p53 = por %p51, %p52
      %p55 = scmp.ne.s32.totalorder %s38, %s54
      %p56 = scmp.eq.s32.totalorder %s18, 0
      %p57 = por %p55, %p56
      %s58 = ssub.s32 %s19, %s31
      %p59 = scmp.eq.s32.totalorder %s58, 0
      %s61 = sadd.s32 %s60, 1
      %s62 = scalar_select %p59, %s60, %s61
      %p65 = pneg %p59
      %p66 = scmp.eq.s32.totalorder %s12, 1
      %p67 = por %p65, %p66
      %p68 = scmp.ne.s32.totalorder %s60, %s63
      %p69 = scmp.eq.s32.totalorder %s12, 0
      %p70 = por %p68, %p69
      %p71 = scmp.ne.s32.totalorder %s60, %s63
      %p72 = scmp.eq.s32.totalorder %s17, 1
      %p73 = por %p71, %p72
      %p74 = scmp.ne.s32.totalorder %s63, %s64
      %p75 = scmp.eq.s32.totalorder %s17, 0
      %p76 = por %p74, %p75
      %p77 = scmp.ne.s32.totalorder %s63, %s64
      %p78 = scmp.eq.s32.totalorder %s18, 1
      %p79 = por %p77, %p78
      %p81 = scmp.ne.s32.totalorder %s64, %s80
      %p82 = scmp.eq.s32.totalorder %s18, 0
      %p83 = por %p81, %p82
      %s84 = ssub.s32 %s19, %s31
      %p85 = scmp.eq.s32.totalorder %s84, 0
      %s87 = sadd.s32 %s86, 1
      %s88 = scalar_select %p85, %s86, %s87
      %p91 = pneg %p85
      %p92 = scmp.eq.s32.totalorder %s12, 1
      %p93 = por %p91, %p92
      %p94 = scmp.ne.s32.totalorder %s86, %s89
      %p95 = scmp.eq.s32.totalorder %s12, 0
      %p96 = por %p94, %p95
      %p97 = scmp.ne.s32.totalorder %s86, %s89
      %p98 = scmp.eq.s32.totalorder %s17, 1
      %p99 = por %p97, %p98
      %p100 = scmp.ne.s32.totalorder %s89, %s90
      %p101 = scmp.eq.s32.totalorder %s17, 0
      %p102 = por %p100, %p101
      %p103 = scmp.ne.s32.totalorder %s89, %s90
      %p104 = scmp.eq.s32.totalorder %s18, 1
      %p105 = por %p103, %p104
      %p107 = scmp.ne.s32.totalorder %s90, %s106
      %p108 = scmp.eq.s32.totalorder %s18, 0
      %p109 = por %p107, %p108
      %s110 = ssub.s32 %s20, %s27
      %s111 = ssub.s32 %s19, %s31
      %s112 = sor.u32 %s110, %s111
      %p113 = scmp.eq.s32.totalorder %s112, 0
      %s115 = sadd.s32 %s114, 1
      %s116 = scalar_select %p113, %s114, %s115
      %p119 = pneg %p113
      %p120 = scmp.eq.s32.totalorder %s12, 1
      %p121 = por %p119, %p120
      %p122 = scmp.ne.s32.totalorder %s114, %s117
      %p123 = scmp.eq.s32.totalorder %s12, 0
      %p124 = por %p122, %p123
      %p125 = scmp.ne.s32.totalorder %s114, %s117
      %p126 = scmp.eq.s32.totalorder %s17, 1
      %p127 = por %p125, %p126
      %p128 = scmp.ne.s32.totalorder %s117, %s118
      %p129 = scmp.eq.s32.totalorder %s17, 0
      %p130 = por %p128, %p129
      %p131 = scmp.ne.s32.totalorder %s117, %s118
      %p132 = scmp.eq.s32.totalorder %s18, 1
      %p133 = por %p131, %p132
      %p135 = scmp.ne.s32.totalorder %s118, %s134
      %p136 = scmp.eq.s32.totalorder %s18, 0
      %p137 = por %p135, %p136
      %p138 = scmp.le.s32.totalorder 1, %s12
      %p139 = scmp.lt.s32.totalorder %s12, 3
      %p140 = pnand %p138, %p139
      %p141 = pneg %p140
      // Predicated region
      $region9: #{tpu_custom_call.1} parent=5 // pred_check
        _
      $region10: #{tpu_custom_call.1} parent=5 // pred_check_branch
        %143 = sbr.rel (%p140) target = $region12
      $region11: #{tpu_custom_call.1} parent=5 // pred_region
        %s144 = ssub.s32 %s12, 1
        // Predicated region
        $region13: #{tpu_custom_call.1} parent=11 // pred_check
          %p145 = pneg %p76
        $region14: #{tpu_custom_call.1} parent=11 // pred_check_branch
          %147 = sbr.rel (%p145) target = $region16
        $region15: #{tpu_custom_call.1} parent=11 // pred_region
          %p148 = scmp.lt.s32.totalorder %s21, 0
          %s149 = scalar_select %p148, %s21, 0
          %s150 = smul.addr %s149, 4
          %s151 = scalar_lea.vmem %s1, %s150
        $region16: #{tpu_custom_call.1} parent=11 // pred_fallthru
          _
        // Predicated region
        $region17: #{tpu_custom_call.1} parent=11 // pred_check
          %p152 = pneg %p102
        $region18: #{tpu_custom_call.1} parent=11 // pred_check_branch
          %154 = sbr.rel (%p152) target = $region20
        $region19: #{tpu_custom_call.1} parent=11 // pred_region
          %p155 = scmp.lt.s32.totalorder %s21, 0
          %s156 = scalar_select %p155, %s21, 0
          %s157 = scalar_lea.vmem %s2, %s156
        $region20: #{tpu_custom_call.1} parent=11 // pred_fallthru
          _
      $region12: #{tpu_custom_call.1} parent=5 // pred_fallthru
        _
      %p158 = scmp.lt.s32.totalorder %s12, 2
      // Predicated region
      $region21: #{tpu_custom_call.1} parent=5 // pred_check
        %p159 = pneg %p158
      $region22: #{tpu_custom_call.1} parent=5 // pred_check_branch
        %161 = sbr.rel (%p159) target = $region24
      $region23: #{tpu_custom_call.1} parent=5 // pred_region
        // Predicated region
        $region25: #{tpu_custom_call.1} parent=23 // pred_check
          %p162 = pneg %p44
        $region26: #{tpu_custom_call.1} parent=23 // pred_check_branch
          %164 = sbr.rel (%p162) target = $region28
        $region27: #{tpu_custom_call.1} parent=23 // pred_region
          %s165 = sand.u32 %s34, 1
          %s166 = scalar_lea.sflag [#allocation3], %s165
          %s167 = sand.u32 %s34, 1
          %s168 = smul.addr %s167, 256
          %s169 = scalar_lea.vmem [#allocation2], %s168
          %s170 = smul.u32 32, %s20
          %172 = vsyncadd %s166, 0
          %s173 = smul.addr %s170, 2
          %s174 = smul.addr %s173, 4
          %s175 = scalar_lea.hbm %s0, %s174
          %s176 = sshll.u32 %s175, 4
          %s177 = int_to_ptr.hbm [resolvable:$true] %s176
          %s178 = sshll.u32 %s169, 4
          %s179 = int_to_ptr.vmem [resolvable:$true] %s178
          %184 = dma.hbm_to_vmem [thread:$0]  %s177, 4096, %s179, %s166, 128, 128, 8
        $region28: #{tpu_custom_call.1} parent=23 // pred_fallthru
          _
      $region24: #{tpu_custom_call.1} parent=5 // pred_fallthru
        _
      %p185 = scmp.le.s32.totalorder 1, %s12
      %p186 = scmp.lt.s32.totalorder %s12, 3
      %p187 = pnand %p185, %p186
      %p188 = pneg %p187
      // Predicated region
      $region29: #{tpu_custom_call.1} parent=5 // pred_check
        _
      $region30: #{tpu_custom_call.1} parent=5 // pred_check_branch
        %190 = sbr.rel (%p187) target = $region32
      $region31: #{tpu_custom_call.1} parent=5 // pred_region
        %s191 = ssub.s32 %s12, 1
        %s192 = sand.u32 %s37, 1
        %s193 = scalar_lea.sflag [#allocation3], %s192
        %s194 = sand.u32 %s37, 1
        %s195 = smul.addr %s194, 256
        %s196 = scalar_lea.vmem [#allocation2], %s195
        // Predicated region
        $region33: #{tpu_custom_call.1} parent=31 // pred_check
          %p197 = pneg %p50
        $region34: #{tpu_custom_call.1} parent=31 // pred_check_branch
          %199 = sbr.rel (%p197) target = $region36
        $region35: #{tpu_custom_call.1} parent=31 // pred_region
          %201 = dma.done %s193, 4096
        $region36: #{tpu_custom_call.1} parent=31 // pred_fallthru
          _
        %s202 = sand.u32 %s37, 1
        %s203 = scalar_lea.sflag [#allocation3], %s202
        %s204 = sand.u32 %s37, 1
        %s205 = smul.addr %s204, 256
        %s206 = scalar_lea.vmem [#allocation2], %s205
        %p207 = pneg %p50
        %p208 = pneg %p47
        %p209 = scmp.lt.s32.totalorder %s21, 0
        %s210 = scalar_select %p209, %s21, 0
        %s211 = smul.addr %s210, 4
        %s212 = scalar_lea.vmem %s1, %s211
        %p213 = pneg %p76
        %p214 = pneg %p73
        %p215 = scmp.lt.s32.totalorder %s21, 0
        %s216 = scalar_select %p215, %s21, 0
        %s217 = scalar_lea.vmem %s2, %s216
        %p218 = pneg %p102
        %p219 = pneg %p99
        %p220 = pneg %p130
        %p221 = pneg %p127
        %s222 = smul.u32 32, %s22
        %p223 = scmp.lt.s32.totalorder %s222, 63
        %s224 = scalar_select %p223, %s222, 63
        %p225 = scmp.lt.s32.totalorder %s21, 0
        %s226 = scalar_select %p225, %s21, 0
        %s227 = sadd.s32 %s226, %s224
        %s228 = smul.addr %s227, 4
        %s229 = scalar_lea.vmem %s3, %s228
        %s230 = smul.u32 32, %s22
        %p231 = scmp.lt.s32.totalorder %s21, 0
        %s232 = scalar_select %p231, %s21, 0
        %s233 = smul.addr %s232, 4
        %s234 = scalar_lea.vmem %s1, %s233
        %p235 = scmp.lt.s32.totalorder %s21, 0
        %s236 = scalar_select %p235, %s21, 0
        %s237 = scalar_lea.vmem %s2, %s236
        %s238 = smul.u32 32, %s22
        %p239 = scmp.lt.s32.totalorder %s238, 63
        %s240 = scalar_select %p239, %s238, 63
        %p241 = scmp.lt.s32.totalorder %s21, 0
        %s242 = scalar_select %p241, %s21, 0
        %s243 = sadd.s32 %s242, %s240
        %s244 = smul.addr %s243, 4
        %s245 = scalar_lea.vmem %s3, %s244
        %s246 = smul.u32 32, %s22
        %v247 = vld [vmem:[%s196] sm:$0xff]
        %v248 = vld [vmem:[%s196 + $0x8] sm:$0xff]
        %v249 = vld [vmem:[%s196 + $0x10] sm:$0xff]
        %v250 = vld [vmem:[%s196 + $0x18] sm:$0xff]
        %v251 = vld [vmem:[%s196 + $0x20] sm:$0xff]
        %v252 = vld [vmem:[%s196 + $0x28] sm:$0xff]
        %v253 = vld [vmem:[%s196 + $0x30] sm:$0xff]
        %v254 = vld [vmem:[%s196 + $0x38] sm:$0xff]
        %v255 = vld [vmem:[%s196 + $0x40] sm:$0xff]
        %v256 = vld [vmem:[%s196 + $0x48] sm:$0xff]
        %v257 = vld [vmem:[%s196 + $0x50] sm:$0xff]
        %v258 = vld [vmem:[%s196 + $0x58] sm:$0xff]
        %v259 = vld [vmem:[%s196 + $0x60] sm:$0xff]
        %v260 = vld [vmem:[%s196 + $0x68] sm:$0xff]
        %v261 = vld [vmem:[%s196 + $0x70] sm:$0xff]
        %v262 = vld [vmem:[%s196 + $0x78] sm:$0xff]
        %v263 = vld [vmem:[%s196 + $0x80] sm:$0xff]
        %v264 = vld [vmem:[%s196 + $0x88] sm:$0xff]
        %v265 = vld [vmem:[%s196 + $0x90] sm:$0xff]
        %v266 = vld [vmem:[%s196 + $0x98] sm:$0xff]
        %v267 = vld [vmem:[%s196 + $0xa0] sm:$0xff]
        %v268 = vld [vmem:[%s196 + $0xa8] sm:$0xff]
        %v269 = vld [vmem:[%s196 + $0xb0] sm:$0xff]
        %v270 = vld [vmem:[%s196 + $0xb8] sm:$0xff]
        %v271 = vld [vmem:[%s196 + $0xc0] sm:$0xff]
        %v272 = vld [vmem:[%s196 + $0xc8] sm:$0xff]
        %v273 = vld [vmem:[%s196 + $0xd0] sm:$0xff]
        %v274 = vld [vmem:[%s196 + $0xd8] sm:$0xff]
        %v275 = vld [vmem:[%s196 + $0xe0] sm:$0xff]
        %v276 = vld [vmem:[%s196 + $0xe8] sm:$0xff]
        %v277 = vld [vmem:[%s196 + $0xf0] sm:$0xff]
        %v278 = vld [vmem:[%s196 + $0xf8] sm:$0xff]
        %v279 = vld [vmem:[%s234] sm:$0xf]
        %v280 = vld [vmem:[%s234 + $0x4] sm:$0xf]
        %v281 = vld [vmem:[%s234 + $0x8] sm:$0xf]
        %v282 = vld [vmem:[%s234 + $0xc] sm:$0xf]
        %v283 = vld [vmem:[%s234 + $0x10] sm:$0xf]
        %v284 = vld [vmem:[%s234 + $0x14] sm:$0xf]
        %v285 = vld [vmem:[%s234 + $0x18] sm:$0xf]
        %v286 = vld [vmem:[%s234 + $0x1c] sm:$0xf]
        %v287 = vld [vmem:[%s234 + $0x20] sm:$0xf]
        %v288 = vld [vmem:[%s234 + $0x24] sm:$0xf]
        %v289 = vld [vmem:[%s234 + $0x28] sm:$0xf]
        %v290 = vld [vmem:[%s234 + $0x2c] sm:$0xf]
        %v291 = vld [vmem:[%s234 + $0x30] sm:$0xf]
        %v292 = vld [vmem:[%s234 + $0x34] sm:$0xf]
        %v293 = vld [vmem:[%s234 + $0x38] sm:$0xf]
        %v294 = vld [vmem:[%s234 + $0x3c] sm:$0xf]
        %v295 = vld [vmem:[%s234 + $0x40] sm:$0xf]
        %v296 = vld [vmem:[%s234 + $0x44] sm:$0xf]
        %v297 = vld [vmem:[%s234 + $0x48] sm:$0xf]
        %v298 = vld [vmem:[%s234 + $0x4c] sm:$0xf]
        %v299 = vld [vmem:[%s234 + $0x50] sm:$0xf]
        %v300 = vld [vmem:[%s234 + $0x54] sm:$0xf]
        %v301 = vld [vmem:[%s234 + $0x58] sm:$0xf]
        %v302 = vld [vmem:[%s234 + $0x5c] sm:$0xf]
        %v303 = vld [vmem:[%s234 + $0x60] sm:$0xf]
        %v304 = vld [vmem:[%s234 + $0x64] sm:$0xf]
        %v305 = vld [vmem:[%s234 + $0x68] sm:$0xf]
        %v306 = vld [vmem:[%s234 + $0x6c] sm:$0xf]
        %v307 = vld [vmem:[%s234 + $0x70] sm:$0xf]
        %v308 = vld [vmem:[%s234 + $0x74] sm:$0xf]
        %v309 = vld [vmem:[%s234 + $0x78] sm:$0xf]
        %v310 = vld [vmem:[%s234 + $0x7c] sm:$0xf]
        %v311 = vld [vmem:[%s237] sm:$0x1]
        %v313 = vperm.slane %v311, 0
        %v347 = vunpack.c.l.b16 %v247
        %v348 = vunpack.c.h.b16 %v247
        %v349 = vunpack.c.l.b16 %v248
        %v350 = vunpack.c.h.b16 %v248
        %v351 = vunpack.c.l.b16 %v249
        %v352 = vunpack.c.h.b16 %v249
        %v353 = vunpack.c.l.b16 %v250
        %v354 = vunpack.c.h.b16 %v250
        %v355 = vunpack.c.l.b16 %v251
        %v356 = vunpack.c.h.b16 %v251
        %v357 = vunpack.c.l.b16 %v252
        %v358 = vunpack.c.h.b16 %v252
        %v359 = vunpack.c.l.b16 %v253
        %v360 = vunpack.c.h.b16 %v253
        %v361 = vunpack.c.l.b16 %v254
        %v362 = vunpack.c.h.b16 %v254
        %v363 = vunpack.c.l.b16 %v255
        %v364 = vunpack.c.h.b16 %v255
        %v365 = vunpack.c.l.b16 %v256
        %v366 = vunpack.c.h.b16 %v256
        %v367 = vunpack.c.l.b16 %v257
        %v368 = vunpack.c.h.b16 %v257
        %v369 = vunpack.c.l.b16 %v258
        %v370 = vunpack.c.h.b16 %v258
        %v371 = vunpack.c.l.b16 %v259
        %v372 = vunpack.c.h.b16 %v259
        %v373 = vunpack.c.l.b16 %v260
        %v374 = vunpack.c.h.b16 %v260
        %v375 = vunpack.c.l.b16 %v261
        %v376 = vunpack.c.h.b16 %v261
        %v377 = vunpack.c.l.b16 %v262
        %v378 = vunpack.c.h.b16 %v262
        %v379 = vunpack.c.l.b16 %v263
        %v380 = vunpack.c.h.b16 %v263
        %v381 = vunpack.c.l.b16 %v264
        %v382 = vunpack.c.h.b16 %v264
        %v383 = vunpack.c.l.b16 %v265
        %v384 = vunpack.c.h.b16 %v265
        %v385 = vunpack.c.l.b16 %v266
        %v386 = vunpack.c.h.b16 %v266
        %v387 = vunpack.c.l.b16 %v267
        %v388 = vunpack.c.h.b16 %v267
        %v389 = vunpack.c.l.b16 %v268
        %v390 = vunpack.c.h.b16 %v268
        %v391 = vunpack.c.l.b16 %v269
        %v392 = vunpack.c.h.b16 %v269
        %v393 = vunpack.c.l.b16 %v270
        %v394 = vunpack.c.h.b16 %v270
        %v395 = vunpack.c.l.b16 %v271
        %v396 = vunpack.c.h.b16 %v271
        %v397 = vunpack.c.l.b16 %v272
        %v398 = vunpack.c.h.b16 %v272
        %v399 = vunpack.c.l.b16 %v273
        %v400 = vunpack.c.h.b16 %v273
        %v401 = vunpack.c.l.b16 %v274
        %v402 = vunpack.c.h.b16 %v274
        %v403 = vunpack.c.l.b16 %v275
        %v404 = vunpack.c.h.b16 %v275
        %v405 = vunpack.c.l.b16 %v276
        %v406 = vunpack.c.h.b16 %v276
        %v407 = vunpack.c.l.b16 %v277
        %v408 = vunpack.c.h.b16 %v277
        %v409 = vunpack.c.l.b16 %v278
        %v410 = vunpack.c.h.b16 %v278
        %v411 = vpack.c.b16 %v349, %v347
        %v412 = vpack.c.b16 %v350, %v348
        %v413 = vpack.c.b16 %v353, %v351
        %v414 = vpack.c.b16 %v354, %v352
        %v415 = vpack.c.b16 %v357, %v355
        %v416 = vpack.c.b16 %v358, %v356
        %v417 = vpack.c.b16 %v361, %v359
        %v418 = vpack.c.b16 %v362, %v360
        %v419 = vpack.c.b16 %v365, %v363
        %v420 = vpack.c.b16 %v366, %v364
        %v421 = vpack.c.b16 %v369, %v367
        %v422 = vpack.c.b16 %v370, %v368
        %v423 = vpack.c.b16 %v373, %v371
        %v424 = vpack.c.b16 %v374, %v372
        %v425 = vpack.c.b16 %v377, %v375
        %v426 = vpack.c.b16 %v378, %v376
        %v427 = vpack.c.b16 %v381, %v379
        %v428 = vpack.c.b16 %v382, %v380
        %v429 = vpack.c.b16 %v385, %v383
        %v430 = vpack.c.b16 %v386, %v384
        %v431 = vpack.c.b16 %v389, %v387
        %v432 = vpack.c.b16 %v390, %v388
        %v433 = vpack.c.b16 %v393, %v391
        %v434 = vpack.c.b16 %v394, %v392
        %v435 = vpack.c.b16 %v397, %v395
        %v436 = vpack.c.b16 %v398, %v396
        %v437 = vpack.c.b16 %v401, %v399
        %v438 = vpack.c.b16 %v402, %v400
        %v439 = vpack.c.b16 %v405, %v403
        %v440 = vpack.c.b16 %v406, %v404
        %v441 = vpack.c.b16 %v409, %v407
        %v442 = vpack.c.b16 %v410, %v408
        %v507 = vunpack.c.l.b16 %v279
        %v508 = vunpack.c.l.b16 %v280
        %v509 = vunpack.c.l.b16 %v281
        %v510 = vunpack.c.l.b16 %v282
        %v511 = vunpack.c.l.b16 %v283
        %v512 = vunpack.c.l.b16 %v284
        %v513 = vunpack.c.l.b16 %v285
        %v514 = vunpack.c.l.b16 %v286
        %v515 = vunpack.c.l.b16 %v287
        %v516 = vunpack.c.l.b16 %v288
        %v517 = vunpack.c.l.b16 %v289
        %v518 = vunpack.c.l.b16 %v290
        %v519 = vunpack.c.l.b16 %v291
        %v520 = vunpack.c.l.b16 %v292
        %v521 = vunpack.c.l.b16 %v293
        %v522 = vunpack.c.l.b16 %v294
        %v523 = vunpack.c.l.b16 %v295
        %v524 = vunpack.c.l.b16 %v296
        %v525 = vunpack.c.l.b16 %v297
        %v526 = vunpack.c.l.b16 %v298
        %v527 = vunpack.c.l.b16 %v299
        %v528 = vunpack.c.l.b16 %v300
        %v529 = vunpack.c.l.b16 %v301
        %v530 = vunpack.c.l.b16 %v302
        %v531 = vunpack.c.l.b16 %v303
        %v532 = vunpack.c.l.b16 %v304
        %v533 = vunpack.c.l.b16 %v305
        %v534 = vunpack.c.l.b16 %v306
        %v535 = vunpack.c.l.b16 %v307
        %v536 = vunpack.c.l.b16 %v308
        %v537 = vunpack.c.l.b16 %v309
        %v538 = vunpack.c.l.b16 %v310
        %v539 = vpack.c.b16 %v508, %v507
        %v540 = vpack.c.b16 %v510, %v509
        %v541 = vpack.c.b16 %v512, %v511
        %v542 = vpack.c.b16 %v514, %v513
        %v543 = vpack.c.b16 %v516, %v515
        %v544 = vpack.c.b16 %v518, %v517
        %v545 = vpack.c.b16 %v520, %v519
        %v546 = vpack.c.b16 %v522, %v521
        %v547 = vpack.c.b16 %v524, %v523
        %v548 = vpack.c.b16 %v526, %v525
        %v549 = vpack.c.b16 %v528, %v527
        %v550 = vpack.c.b16 %v530, %v529
        %v551 = vpack.c.b16 %v532, %v531
        %v552 = vpack.c.b16 %v534, %v533
        %v553 = vpack.c.b16 %v536, %v535
        %v554 = vpack.c.b16 %v538, %v537
        %571 = vmatpush.bf16.msra.mxu0 %v546
        %572 = vmatpush.bf16.msra.mxu0 %v545
        %573 = vmatpush.bf16.msra.mxu0 %v544
        %574 = vmatpush.bf16.msra.mxu0 %v543
        %575 = vmatpush.bf16.msra.mxu0 %v542
        %576 = vmatpush.bf16.msra.mxu0 %v541
        %577 = vmatpush.bf16.msra.mxu0 %v540
        %578 = vmatpush.bf16.msra.mxu0 %v539
        %579 = vmatmul.bf16.gmra.mxu0 %v411
        %v580 = vpop.f32.mrf.mxu0
        %v581 = vadd.f32 %v313, %v580
        %v582 = vpop.f32.mrf.mxu0
        %v583 = vadd.f32 %v313, %v582
        %584 = vmatmul.bf16.gmra.mxu0 %v413
        %v585 = vpop.f32.mrf.mxu0
        %v586 = vadd.f32 %v313, %v585
        %v587 = vpop.f32.mrf.mxu0
        %v588 = vadd.f32 %v313, %v587
        %589 = vmatmul.bf16.gmra.mxu0 %v415
        %v590 = vpop.f32.mrf.mxu0
        %v591 = vadd.f32 %v313, %v590
        %v592 = vpop.f32.mrf.mxu0
        %v593 = vadd.f32 %v313, %v592
        %594 = vmatmul.bf16.gmra.mxu0 %v417
        %v595 = vpop.f32.mrf.mxu0
        %v596 = vadd.f32 %v313, %v595
        %v597 = vpop.f32.mrf.mxu0
        %v598 = vadd.f32 %v313, %v597
        %599 = vmatmul.bf16.gmra.mxu0 %v419
        %v600 = vpop.f32.mrf.mxu0
        %v601 = vadd.f32 %v313, %v600
        %v602 = vpop.f32.mrf.mxu0
        %v603 = vadd.f32 %v313, %v602
        %604 = vmatmul.bf16.gmra.mxu0 %v421
        %v605 = vpop.f32.mrf.mxu0
        %v606 = vadd.f32 %v313, %v605
        %v607 = vpop.f32.mrf.mxu0
        %v608 = vadd.f32 %v313, %v607
        %609 = vmatmul.bf16.gmra.mxu0 %v423
        %v610 = vpop.f32.mrf.mxu0
        %v611 = vadd.f32 %v313, %v610
        %v612 = vpop.f32.mrf.mxu0
        %v613 = vadd.f32 %v313, %v612
        %614 = vmatmul.bf16.gmra.mxu0 %v425
        %v615 = vpop.f32.mrf.mxu0
        %v616 = vadd.f32 %v313, %v615
        %v617 = vpop.f32.mrf.mxu0
        %v618 = vadd.f32 %v313, %v617
        %619 = vmatmul.bf16.gmra.mxu0 %v427
        %v620 = vpop.f32.mrf.mxu0
        %v621 = vadd.f32 %v313, %v620
        %v622 = vpop.f32.mrf.mxu0
        %v623 = vadd.f32 %v313, %v622
        %624 = vmatmul.bf16.gmra.mxu0 %v429
        %v625 = vpop.f32.mrf.mxu0
        %v626 = vadd.f32 %v313, %v625
        %v627 = vpop.f32.mrf.mxu0
        %v628 = vadd.f32 %v313, %v627
        %629 = vmatmul.bf16.gmra.mxu0 %v431
        %v630 = vpop.f32.mrf.mxu0
        %v631 = vadd.f32 %v313, %v630
        %v632 = vpop.f32.mrf.mxu0
        %v633 = vadd.f32 %v313, %v632
        %634 = vmatmul.bf16.gmra.mxu0 %v433
        %v635 = vpop.f32.mrf.mxu0
        %v636 = vadd.f32 %v313, %v635
        %v637 = vpop.f32.mrf.mxu0
        %v638 = vadd.f32 %v313, %v637
        %639 = vmatmul.bf16.gmra.mxu0 %v435
        %v640 = vpop.f32.mrf.mxu0
        %v641 = vadd.f32 %v313, %v640
        %v642 = vpop.f32.mrf.mxu0
        %v643 = vadd.f32 %v313, %v642
        %644 = vmatmul.bf16.gmra.mxu0 %v437
        %v645 = vpop.f32.mrf.mxu0
        %v646 = vadd.f32 %v313, %v645
        %v647 = vpop.f32.mrf.mxu0
        %v648 = vadd.f32 %v313, %v647
        %649 = vmatmul.bf16.gmra.mxu0 %v439
        %v650 = vpop.f32.mrf.mxu0
        %v651 = vadd.f32 %v313, %v650
        %v652 = vpop.f32.mrf.mxu0
        %v653 = vadd.f32 %v313, %v652
        %654 = vmatmul.bf16.gmra.mxu0 %v441
        %v655 = vpop.f32.mrf.mxu0
        %v656 = vadd.f32 %v313, %v655
        %v657 = vpop.f32.mrf.mxu0
        %v658 = vadd.f32 %v313, %v657
        %659 = vdwg.mxu0
        %660 = vmatpush.bf16.msra.mxu0 %v554
        %661 = vmatpush.bf16.msra.mxu0 %v553
        %662 = vmatpush.bf16.msra.mxu0 %v552
        %663 = vmatpush.bf16.msra.mxu0 %v551
        %664 = vmatpush.bf16.msra.mxu0 %v550
        %665 = vmatpush.bf16.msra.mxu0 %v549
        %666 = vmatpush.bf16.msra.mxu0 %v548
        %667 = vmatpush.bf16.msra.mxu0 %v547
        %668 = vmatmul.bf16.gmra.mxu0 %v412
        %v669 = vpop.f32.mrf.mxu0
        %v670 = vadd.f32 %v581, %v669
        %v671 = vpop.f32.mrf.mxu0
        %v672 = vadd.f32 %v583, %v671
        %673 = vmatmul.bf16.gmra.mxu0 %v414
        %v674 = vpop.f32.mrf.mxu0
        %v675 = vadd.f32 %v586, %v674
        %v676 = vpop.f32.mrf.mxu0
        %v677 = vadd.f32 %v588, %v676
        %678 = vmatmul.bf16.gmra.mxu0 %v416
        %v679 = vpop.f32.mrf.mxu0
        %v680 = vadd.f32 %v591, %v679
        %v681 = vpop.f32.mrf.mxu0
        %v682 = vadd.f32 %v593, %v681
        %683 = vmatmul.bf16.gmra.mxu0 %v418
        %v684 = vpop.f32.mrf.mxu0
        %v685 = vadd.f32 %v596, %v684
        %v686 = vpop.f32.mrf.mxu0
        %v687 = vadd.f32 %v598, %v686
        %688 = vmatmul.bf16.gmra.mxu0 %v420
        %v689 = vpop.f32.mrf.mxu0
        %v690 = vadd.f32 %v601, %v689
        %v691 = vpop.f32.mrf.mxu0
        %v692 = vadd.f32 %v603, %v691
        %693 = vmatmul.bf16.gmra.mxu0 %v422
        %v694 = vpop.f32.mrf.mxu0
        %v695 = vadd.f32 %v606, %v694
        %v696 = vpop.f32.mrf.mxu0
        %v697 = vadd.f32 %v608, %v696
        %698 = vmatmul.bf16.gmra.mxu0 %v424
        %v699 = vpop.f32.mrf.mxu0
        %v700 = vadd.f32 %v611, %v699
        %v701 = vpop.f32.mrf.mxu0
        %v702 = vadd.f32 %v613, %v701
        %703 = vmatmul.bf16.gmra.mxu0 %v426
        %v704 = vpop.f32.mrf.mxu0
        %v705 = vadd.f32 %v616, %v704
        %v706 = vpop.f32.mrf.mxu0
        %v707 = vadd.f32 %v618, %v706
        %708 = vmatmul.bf16.gmra.mxu0 %v428
        %v709 = vpop.f32.mrf.mxu0
        %v710 = vadd.f32 %v621, %v709
        %v711 = vpop.f32.mrf.mxu0
        %v712 = vadd.f32 %v623, %v711
        %713 = vmatmul.bf16.gmra.mxu0 %v430
        %v714 = vpop.f32.mrf.mxu0
        %v715 = vadd.f32 %v626, %v714
        %v716 = vpop.f32.mrf.mxu0
        %v717 = vadd.f32 %v628, %v716
        %718 = vmatmul.bf16.gmra.mxu0 %v432
        %v719 = vpop.f32.mrf.mxu0
        %v720 = vadd.f32 %v631, %v719
        %v721 = vpop.f32.mrf.mxu0
        %v722 = vadd.f32 %v633, %v721
        %723 = vmatmul.bf16.gmra.mxu0 %v434
        %v724 = vpop.f32.mrf.mxu0
        %v725 = vadd.f32 %v636, %v724
        %v726 = vpop.f32.mrf.mxu0
        %v727 = vadd.f32 %v638, %v726
        %728 = vmatmul.bf16.gmra.mxu0 %v436
        %v729 = vpop.f32.mrf.mxu0
        %v730 = vadd.f32 %v641, %v729
        %v731 = vpop.f32.mrf.mxu0
        %v732 = vadd.f32 %v643, %v731
        %733 = vmatmul.bf16.gmra.mxu0 %v438
        %v734 = vpop.f32.mrf.mxu0
        %v735 = vadd.f32 %v646, %v734
        %v736 = vpop.f32.mrf.mxu0
        %v737 = vadd.f32 %v648, %v736
        %738 = vmatmul.bf16.gmra.mxu0 %v440
        %v739 = vpop.f32.mrf.mxu0
        %v740 = vadd.f32 %v651, %v739
        %v741 = vpop.f32.mrf.mxu0
        %v742 = vadd.f32 %v653, %v741
        %743 = vmatmul.bf16.gmra.mxu0 %v442
        %v744 = vpop.f32.mrf.mxu0
        %v745 = vadd.f32 %v656, %v744
        %v746 = vpop.f32.mrf.mxu0
        %v747 = vadd.f32 %v658, %v746
        %748 = vdwg.mxu0
        %v749 = vmax.f32 %v670, 0.0
        %v750 = vmax.f32 %v672, 0.0
        %v751 = vmax.f32 %v675, 0.0
        %v752 = vmax.f32 %v677, 0.0
        %v753 = vmax.f32 %v680, 0.0
        %v754 = vmax.f32 %v682, 0.0
        %v755 = vmax.f32 %v685, 0.0
        %v756 = vmax.f32 %v687, 0.0
        %v757 = vmax.f32 %v690, 0.0
        %v758 = vmax.f32 %v692, 0.0
        %v759 = vmax.f32 %v695, 0.0
        %v760 = vmax.f32 %v697, 0.0
        %v761 = vmax.f32 %v700, 0.0
        %v762 = vmax.f32 %v702, 0.0
        %v763 = vmax.f32 %v705, 0.0
        %v764 = vmax.f32 %v707, 0.0
        %v765 = vmax.f32 %v710, 0.0
        %v766 = vmax.f32 %v712, 0.0
        %v767 = vmax.f32 %v715, 0.0
        %v768 = vmax.f32 %v717, 0.0
        %v769 = vmax.f32 %v720, 0.0
        %v770 = vmax.f32 %v722, 0.0
        %v771 = vmax.f32 %v725, 0.0
        %v772 = vmax.f32 %v727, 0.0
        %v773 = vmax.f32 %v730, 0.0
        %v774 = vmax.f32 %v732, 0.0
        %v775 = vmax.f32 %v735, 0.0
        %v776 = vmax.f32 %v737, 0.0
        %v777 = vmax.f32 %v740, 0.0
        %v778 = vmax.f32 %v742, 0.0
        %v779 = vmax.f32 %v745, 0.0
        %v780 = vmax.f32 %v747, 0.0
        %v781 = vpack.c.bf16 %v749, %v749
        %v782 = vpack.c.bf16 %v750, %v750
        %v783 = vpack.c.bf16 %v751, %v751
        %v784 = vpack.c.bf16 %v752, %v752
        %v785 = vpack.c.bf16 %v753, %v753
        %v786 = vpack.c.bf16 %v754, %v754
        %v787 = vpack.c.bf16 %v755, %v755
        %v788 = vpack.c.bf16 %v756, %v756
        %v789 = vpack.c.bf16 %v757, %v757
        %v790 = vpack.c.bf16 %v758, %v758
        %v791 = vpack.c.bf16 %v759, %v759
        %v792 = vpack.c.bf16 %v760, %v760
        %v793 = vpack.c.bf16 %v761, %v761
        %v794 = vpack.c.bf16 %v762, %v762
        %v795 = vpack.c.bf16 %v763, %v763
        %v796 = vpack.c.bf16 %v764, %v764
        %v797 = vpack.c.bf16 %v765, %v765
        %v798 = vpack.c.bf16 %v766, %v766
        %v799 = vpack.c.bf16 %v767, %v767
        %v800 = vpack.c.bf16 %v768, %v768
        %v801 = vpack.c.bf16 %v769, %v769
        %v802 = vpack.c.bf16 %v770, %v770
        %v803 = vpack.c.bf16 %v771, %v771
        %v804 = vpack.c.bf16 %v772, %v772
        %v805 = vpack.c.bf16 %v773, %v773
        %v806 = vpack.c.bf16 %v774, %v774
        %v807 = vpack.c.bf16 %v775, %v775
        %v808 = vpack.c.bf16 %v776, %v776
        %v809 = vpack.c.bf16 %v777, %v777
        %v810 = vpack.c.bf16 %v778, %v778
        %v811 = vpack.c.bf16 %v779, %v779
        %v812 = vpack.c.bf16 %v780, %v780
        %vm813 = vcmask 519168
        %814 = vst.msk [vmem:[%s245] sm:$0xf] %vm813, %v781
        %815 = vst.msk [vmem:[%s245 + $0x4] sm:$0xf] %vm813, %v782
        %816 = vst.msk [vmem:[%s245 + $0x8] sm:$0xf] %vm813, %v783
        %817 = vst.msk [vmem:[%s245 + $0xc] sm:$0xf] %vm813, %v784
        %818 = vst.msk [vmem:[%s245 + $0x10] sm:$0xf] %vm813, %v785
        %819 = vst.msk [vmem:[%s245 + $0x14] sm:$0xf] %vm813, %v786
        %820 = vst.msk [vmem:[%s245 + $0x18] sm:$0xf] %vm813, %v787
        %821 = vst.msk [vmem:[%s245 + $0x1c] sm:$0xf] %vm813, %v788
        %822 = vst.msk [vmem:[%s245 + $0x20] sm:$0xf] %vm813, %v789
        %823 = vst.msk [vmem:[%s245 + $0x24] sm:$0xf] %vm813, %v790
        %824 = vst.msk [vmem:[%s245 + $0x28] sm:$0xf] %vm813, %v791
        %825 = vst.msk [vmem:[%s245 + $0x2c] sm:$0xf] %vm813, %v792
        %826 = vst.msk [vmem:[%s245 + $0x30] sm:$0xf] %vm813, %v793
        %827 = vst.msk [vmem:[%s245 + $0x34] sm:$0xf] %vm813, %v794
        %828 = vst.msk [vmem:[%s245 + $0x38] sm:$0xf] %vm813, %v795
        %829 = vst.msk [vmem:[%s245 + $0x3c] sm:$0xf] %vm813, %v796
        %830 = vst.msk [vmem:[%s245 + $0x40] sm:$0xf] %vm813, %v797
        %831 = vst.msk [vmem:[%s245 + $0x44] sm:$0xf] %vm813, %v798
        %832 = vst.msk [vmem:[%s245 + $0x48] sm:$0xf] %vm813, %v799
        %833 = vst.msk [vmem:[%s245 + $0x4c] sm:$0xf] %vm813, %v800
        %834 = vst.msk [vmem:[%s245 + $0x50] sm:$0xf] %vm813, %v801
        %835 = vst.msk [vmem:[%s245 + $0x54] sm:$0xf] %vm813, %v802
        %836 = vst.msk [vmem:[%s245 + $0x58] sm:$0xf] %vm813, %v803
        %837 = vst.msk [vmem:[%s245 + $0x5c] sm:$0xf] %vm813, %v804
        %838 = vst.msk [vmem:[%s245 + $0x60] sm:$0xf] %vm813, %v805
        %839 = vst.msk [vmem:[%s245 + $0x64] sm:$0xf] %vm813, %v806
        %840 = vst.msk [vmem:[%s245 + $0x68] sm:$0xf] %vm813, %v807
        %841 = vst.msk [vmem:[%s245 + $0x6c] sm:$0xf] %vm813, %v808
        %842 = vst.msk [vmem:[%s245 + $0x70] sm:$0xf] %vm813, %v809
        %843 = vst.msk [vmem:[%s245 + $0x74] sm:$0xf] %vm813, %v810
        %844 = vst.msk [vmem:[%s245 + $0x78] sm:$0xf] %vm813, %v811
        %845 = vst.msk [vmem:[%s245 + $0x7c] sm:$0xf] %vm813, %v812
        %s846 = smul.u32 32, %s22
        %p847 = scmp.lt.s32.totalorder %s846, 63
        %s848 = scalar_select %p847, %s846, 63
        %p849 = scmp.lt.s32.totalorder %s21, 0
        %s850 = scalar_select %p849, %s21, 0
        %s851 = sadd.s32 %s850, %s848
        %s852 = smul.addr %s851, 4
        %s853 = scalar_lea.vmem %s3, %s852
        // Predicated region
        $region37: #{tpu_custom_call.1} parent=31 // pred_check
          %p854 = pneg %p127
        $region38: #{tpu_custom_call.1} parent=31 // pred_check_branch
          %856 = sbr.rel (%p854) target = $region40
        $region39: #{tpu_custom_call.1} parent=31 // pred_region
          %s857 = smul.u32 32, %s22
        $region40: #{tpu_custom_call.1} parent=31 // pred_fallthru
          _
      $region32: #{tpu_custom_call.1} parent=5 // pred_fallthru
        _
      %p858 = scmp.le.s32.totalorder 2, %s12
      // Predicated region
      $region41: #{tpu_custom_call.1} parent=5 // pred_check
        %p859 = pneg %p858
      $region42: #{tpu_custom_call.1} parent=5 // pred_check_branch
        %861 = sbr.rel (%p859) target = $region44
      $region43: #{tpu_custom_call.1} parent=5 // pred_region
        %s862 = ssub.s32 %s12, 2
        // Predicated region
        $region45: #{tpu_custom_call.1} parent=43 // pred_check
          %p863 = pneg %p133
        $region46: #{tpu_custom_call.1} parent=43 // pred_check_branch
          %865 = sbr.rel (%p863) target = $region48
        $region47: #{tpu_custom_call.1} parent=43 // pred_region
          %s866 = smul.u32 32, %s24
          %p867 = scmp.lt.s32.totalorder %s866, 63
          %s868 = scalar_select %p867, %s866, 63
          %p869 = scmp.lt.s32.totalorder %s23, 0
          %s870 = scalar_select %p869, %s23, 0
          %s871 = sadd.s32 %s870, %s868
          %s872 = smul.addr %s871, 4
          %s873 = scalar_lea.vmem %s3, %s872
        $region48: #{tpu_custom_call.1} parent=43 // pred_fallthru
          _
      $region44: #{tpu_custom_call.1} parent=5 // pred_fallthru
        _
    $region6: #{tpu_custom_call.1} parent=1 // loop_footer
      %s16 = sadd.s32 1, %s12
    $region7: #{tpu_custom_call.1} parent=1 // loop_footer_branch
      %11 = sbr.rel target = $region3
    $region8: #{tpu_custom_call.1} parent=1 // loop_exit
      _
    %874 = vsyncpa [#allocation3], 1
    %s875 = scalar_lea.sflag [#allocation3], 1
    %876 = vsyncpa %s875, 1

</llo_original>
